<compile_context>
chip_gen: v7x
topology: tpu7x:2x2x1
jax: 0.10.0
libtpu: 0.0.40
codegen_flags: <defaults>
</compile_context>

<pallas_src>
import functools

import jax
import jax.numpy as jnp
from jax.experimental import pallas as pl
from jax.experimental.pallas import tpu as pltpu


def _patch_embed_kernel(x_ref, w_ref, b_ref, o_ref):
    # x_ref: (tm, K) patch tile (compute dtype, e.g. bf16)
    # w_ref: (K, E)  projection weight, already transposed (compute dtype)
    # b_ref: (1, E)  bias (f32)
    # o_ref: (tm, E) output tile
    acc = jnp.dot(x_ref[...], w_ref[...], preferred_element_type=jnp.float32)
    o_ref[...] = (acc + b_ref[...]).astype(o_ref.dtype)


def _round_up(x, m):
    return ((x + m - 1) // m) * m


@functools.partial(
    jax.jit,
    static_argnames=("patch_size", "compute_dtype", "out_dtype", "tile_m"),
)
def patch_embed(x, weight, bias, *, patch_size, compute_dtype=jnp.bfloat16,
                out_dtype=None, tile_m=512):
    """x: (B, C, H, W); weight: (E, C, pH, pW); bias: (E,).

    Returns (B, num_patches, E), matching PyTorch PatchEmbed.forward.

    bf16 operands + f32 MXU accumulation are used on all TPU generations
    (full-rate on the MXU everywhere, and halves the streamed patch bytes of a
    bandwidth-bound kernel).  Pass compute_dtype=jnp.float32 only if strict
    f32 Conv2d parity is required.  out_dtype defaults to x.dtype (f32 parity
    with the PyTorch module); pass jnp.bfloat16 when the consumer is bf16 to
    cut the dominant output HBM stream in half.
    """
    B, C, H, W = x.shape
    pH = pW = patch_size
    assert H % pH == 0 and W % pW == 0
    gh, gw = H // pH, W // pW
    E = weight.shape[0]
    K = C * pH * pW
    num_patches = gh * gw
    M = B * num_patches
    if out_dtype is None:
        out_dtype = x.dtype

    cbytes = jnp.dtype(compute_dtype).itemsize
    obytes = jnp.dtype(out_dtype).itemsize

    # --- patch-extraction glue (candidate for input fusion into the kernel) ---
    # (B, C, gh, pH, gw, pW) -> (B, gh, gw, C, pH, pW) -> (M, K).
    # The bf16 cast is applied right after the transpose so that, if XLA does
    # materialize xp, it is written once in bf16 (half the bytes of f32).
    xp = x.reshape(B, C, gh, pH, gw, pW)
    xp = jnp.transpose(xp, (0, 2, 4, 1, 3, 5)).reshape(M, K)
    xp = xp.astype(compute_dtype)

    # Conv weight (E, C, pH, pW) -> (K, E) so patches @ w == conv output.
    w2d = weight.reshape(E, K).T.astype(compute_dtype)
    b2d = bias.reshape(1, E).astype(jnp.float32)

    # --- row tiling over M; weight/bias/output use a full-E lane-dense block ---
    # Pick the largest tm <= tile_m whose double-buffered VMEM footprint stays
    # within a conservative ~24 MiB budget (v7x physical VMEM is 64 MiB; v5e's
    # 16 MiB scoped default is raised via vmem_limit_bytes below).
    K_pad = _round_up(K, 128)          # lane padding of the patch tile
    E_pad = _round_up(E, 128)
    vmem_budget = 24 << 20

    def footprint(tm_):
        return (2 * tm_ * K_pad * cbytes          # streamed patch tiles (dbl buf)
                + 2 * tm_ * E_pad * obytes        # output tiles (dbl buf)
                + 2 * K_pad * E_pad * cbytes      # weight (grid-invariant)
                + 2 * E_pad * 4)                  # bias

    tm = min(tile_m, _round_up(M, 8))
    tm = max(8, (tm // 8) * 8)
    while tm > 128 and footprint(tm) > vmem_budget:
        tm //= 2
    if M < tm:
        tm = M                          # small-M fallback: full-extent block
    grid_m = pl.cdiv(M, tm)

    vmem_limit = int(min(max(footprint(tm) + (4 << 20), 16 << 20), 48 << 20))

    cost = pl.CostEstimate(
        flops=2 * M * K * E,
        transcendentals=0,
        bytes_accessed=(M * K * cbytes + K * E * cbytes + E * 4
                        + M * E * obytes),
    )

    out = pl.pallas_call(
        _patch_embed_kernel,
        out_shape=jax.ShapeDtypeStruct((M, E), out_dtype),
        grid_spec=pltpu.PrefetchScalarGridSpec(
            num_scalar_prefetch=0,
            grid=(grid_m,),
            in_specs=[
                pl.BlockSpec((tm, K), lambda i: (i, 0)),   # streamed patch tiles
                pl.BlockSpec((K, E), lambda i: (0, 0)),    # weight: DMA'd once
                pl.BlockSpec((1, E), lambda i: (0, 0)),    # bias:   DMA'd once
            ],
            out_specs=pl.BlockSpec((tm, E), lambda i: (i, 0)),
        ),
        compiler_params=pltpu.CompilerParams(
            # single M axis is embarrassingly parallel -> megacore sharding
            dimension_semantics=("parallel",),
            # let XLA fuse the transpose/reshape/cast producing xp into the
            # pallas_call operand (avoids a full extra HBM round-trip).
            allow_input_fusion=[True, False, False],
            vmem_limit_bytes=vmem_limit,
        ),
        cost_estimate=cost,
    )(xp, w2d, b2d)

    return out.reshape(B, num_patches, E)


if __name__ == "__main__":
    # Small shapes consistent with the module's forward semantics:
    # patch_size=14, in_chans=3 (as in the module), reduced image / embed dim
    # so the test stays tiny.
    B, C = 2, 3
    patch_size = 14
    img_size = 56          # 56 % 14 == 0 -> 4x4 = 16 patches per image
    embed_dim = 256

    key = jax.random.PRNGKey(0)
    kx, kw, kb = jax.random.split(key, 3)

    x = jax.random.normal(kx, (B, C, img_size, img_size), dtype=jnp.float32)
    # Deterministic synthetic Conv2d parameters (shapes from nn.Conv2d(C, E, p, p)).
    weight = jax.random.normal(
        kw, (embed_dim, C, patch_size, patch_size), dtype=jnp.float32
    ) * 0.02
    bias = jax.random.normal(kb, (embed_dim,), dtype=jnp.float32) * 0.02

    out = patch_embed(x, weight, bias, patch_size=patch_size)
    out = jax.block_until_ready(out)

    # Reference: same bf16-operand / f32-accumulate math path as the kernel
    # (validates kernel correctness; bf16 operands deviate from f32 Conv2d at
    # the ~1e-2 level, use compute_dtype=float32 for strict parity).
    gh = gw = img_size // patch_size
    K = C * patch_size * patch_size
    xp = x.reshape(B, C, gh, patch_size, gw, patch_size)
    xp = jnp.transpose(xp, (0, 2, 4, 1, 3, 5)).reshape(B * gh * gw, K)
    w2d = weight.reshape(embed_dim, K).T
    ref = (
        jnp.dot(xp.astype(jnp.bfloat16), w2d.astype(jnp.bfloat16),
                preferred_element_type=jnp.float32)
        + bias
    ).reshape(B, gh * gw, embed_dim)

    assert out.shape == (B, gh * gw, embed_dim)
    max_err = float(jnp.max(jnp.abs(out - ref)))
    assert jnp.allclose(out, ref, atol=1e-2, rtol=1e-2), max_err

    print("KERNEL_OK")
</pallas_src>

<mosaic_0001>
module attributes {stable_mosaic.version = 11 : i64} {
  func.func @_patch_embed_kernel(%arg0: i32, %arg1: memref<32x588xbf16, #tpu.memory_space<vmem>>, %arg2: memref<588x256xbf16, #tpu.memory_space<vmem>>, %arg3: memref<1x256xf32, #tpu.memory_space<vmem>>, %arg4: memref<32x256xf32, #tpu.memory_space<vmem>>) attributes {dimension_semantics = [#tpu.dimension_semantics<parallel>], iteration_bounds = array<i64: 1>, scalar_prefetch = 0 : i64, scratch_operands = 0 : i64, tpu.core_type = #tpu.core_type<tc>, window_params = [{transform_indices = @transform_0, window_bounds = array<i64: 32, 588>}, {pipeline_mode = #tpu.pipeline_mode<synchronous>, transform_indices = @transform_1, window_bounds = array<i64: 588, 256>}, {pipeline_mode = #tpu.pipeline_mode<synchronous>, transform_indices = @transform_2, window_bounds = array<i64: 1, 256>}, {transform_indices = @transform_3, window_bounds = array<i64: 32, 256>}]} {
    %c0 = arith.constant 0 : index
    %c0_0 = arith.constant 0 : index
    %0 = vector.load %arg1[%c0, %c0_0] : memref<32x588xbf16, #tpu.memory_space<vmem>>, vector<32x588xbf16>
    %c0_1 = arith.constant 0 : index
    %c0_2 = arith.constant 0 : index
    %1 = vector.load %arg2[%c0_1, %c0_2] : memref<588x256xbf16, #tpu.memory_space<vmem>>, vector<588x256xbf16>
    %cst = arith.constant dense<0.000000e+00> : vector<32x256xf32>
    %2 = tpu.matmul %0, %1, %cst {dimension_numbers = #tpu.dot_dimension_numbers<[1], [0], [0], [1], [0, 0, 1, 1], [], []>} : vector<32x588xbf16>, vector<588x256xbf16>, vector<32x256xf32> -> vector<32x256xf32>
    %c0_3 = arith.constant 0 : index
    %c0_4 = arith.constant 0 : index
    %3 = vector.load %arg3[%c0_3, %c0_4] : memref<1x256xf32, #tpu.memory_space<vmem>>, vector<1x256xf32>
    %4 = vector.broadcast %3 : vector<1x256xf32> to vector<32x256xf32>
    %5 = arith.addf %2, %4 : vector<32x256xf32>
    %c0_5 = arith.constant 0 : index
    %c0_6 = arith.constant 0 : index
    %6 = vector.load %arg4[%c0_5, %c0_6] : memref<32x256xf32, #tpu.memory_space<vmem>>, vector<32x256xf32>
    tpu.vector_store %arg4[%c0_5, %c0_6], %5 {strides = array<i32>} : memref<32x256xf32, #tpu.memory_space<vmem>>, vector<32x256xf32>,
    return
  }
  func.func @transform_0(%arg0: i32) -> (i32, i32) {
    %c0_i32 = arith.constant 0 : i32
    %c0_i32_0 = arith.constant 0 : i32
    return %arg0, %c0_i32 : i32, i32
  }
  func.func @transform_1(%arg0: i32) -> (i32, i32) {
    %c0_i32 = arith.constant 0 : i32
    %c0_i32_0 = arith.constant 0 : i32
    %c0_i32_1 = arith.constant 0 : i32
    return %c0_i32, %c0_i32_0 : i32, i32
  }
  func.func @transform_2(%arg0: i32) -> (i32, i32) {
    %c0_i32 = arith.constant 0 : i32
    %c0_i32_0 = arith.constant 0 : i32
    %c0_i32_1 = arith.constant 0 : i32
    return %c0_i32, %c0_i32_0 : i32, i32
  }
  func.func @transform_3(%arg0: i32) -> (i32, i32) {
    %c0_i32 = arith.constant 0 : i32
    %c0_i32_0 = arith.constant 0 : i32
    return %arg0, %c0_i32 : i32, i32
  }
}

</mosaic_0001>

<llo_original>
// kernel: patch_embed.1
$region0: #{patch_embed.1}
  #allocation0 [shape = 'u32[]', space=smem, size = 0x4, offset = 0x4, fixed_abs, tag = 'smem constant byte address 0x4 - core index']
  #allocation1 [shape = 'u32[144,128]{1,0:T(1,128)}', space=vmem, size = 0x12000, scoped, tag = 'internal scratch']
  %s0 = inlined_call_operand.vmem [shape: bf16[32,588], index: 0, kind: input, shape index: {}]
  %s1 = inlined_call_operand.vmem [shape: bf16[588,256], index: 1, kind: input, shape index: {}]
  %s2 = inlined_call_operand.vmem [shape: f32[1,256], index: 2, kind: input, shape index: {}]
  %s3 = inlined_call_operand.hbm [shape: f32[32,256], index: 3, kind: output, shape index: {}]
  %s4 = sld [smem:[#allocation0]]
  $region22: #{patch_embed.1} parent=0
    _
  %s6 = ssub.s32 1, %s4
  %s7 = scalar_select 0, %s6, %s4
  $region1: #{patch_embed.1} parent=0
    #allocation2 [shape = 'u8[32768]{0}', space=vmem, size = 0x8000, scoped, tag = 'output window, operand 0, single buffered']
    #allocation3 [shape = 's32[1]{0}', space=sflag, size = 0x4, scoped, tag = 'scoped memory for patch_embed.1']
    %8 = vsyncpa [#allocation3], 0
    // Predicated region
    $region2: #{patch_embed.1} parent=1 // pred_check
      _
    $region3: #{patch_embed.1} parent=1 // pred_check_branch
      %10 = sbr.rel (0) target = $region5
    $region4: #{patch_embed.1} parent=1 // pred_region
      _
    $region5: #{patch_embed.1} parent=1 // pred_fallthru
      _
    // Predicated region
    $region6: #{patch_embed.1} parent=1 // pred_check
      _
    $region7: #{patch_embed.1} parent=1 // pred_check_branch
      %12 = sbr.rel (0) target = $region9
    $region8: #{patch_embed.1} parent=1 // pred_region
      _
    $region9: #{patch_embed.1} parent=1 // pred_fallthru
      _
    // Predicated region
    $region10: #{patch_embed.1} parent=1 // pred_check
      _
    $region11: #{patch_embed.1} parent=1 // pred_check_branch
      %14 = sbr.rel (0) target = $region13
    $region12: #{patch_embed.1} parent=1 // pred_region
      _
    $region13: #{patch_embed.1} parent=1 // pred_fallthru
      _
    %v16 = vld [vmem:[%s0] sm:$0xff]
    %v17 = vld [vmem:[%s0 + $0x8] sm:$0xff]
    %v18 = vld [vmem:[%s0 + $0x10] sm:$0xf]
    %v19 = vld [vmem:[%s0 + $0x14] sm:$0xff]
    %v20 = vld [vmem:[%s0 + $0x1c] sm:$0xff]
    %v21 = vld [vmem:[%s0 + $0x24] sm:$0xf]
    %v22 = vld [vmem:[%s0 + $0x28] sm:$0xff]
    %v23 = vld [vmem:[%s0 + $0x30] sm:$0xff]
    %v24 = vld [vmem:[%s0 + $0x38] sm:$0xf]
    %v25 = vld [vmem:[%s0 + $0x3c] sm:$0xff]
    %v26 = vld [vmem:[%s0 + $0x44] sm:$0xff]
    %v27 = vld [vmem:[%s0 + $0x4c] sm:$0xf]
    %v28 = vld [vmem:[%s1] sm:$0xff]
    %v29 = vld [vmem:[%s1 + $0x8] sm:$0xff]
    %v30 = vld [vmem:[%s1 + $0x10] sm:$0xff]
    %v31 = vld [vmem:[%s1 + $0x18] sm:$0xff]
    %v32 = vld [vmem:[%s1 + $0x20] sm:$0xff]
    %v33 = vld [vmem:[%s1 + $0x28] sm:$0xff]
    %v34 = vld [vmem:[%s1 + $0x30] sm:$0xff]
    %v35 = vld [vmem:[%s1 + $0x38] sm:$0xff]
    %v36 = vld [vmem:[%s1 + $0x40] sm:$0xff]
    %v37 = vld [vmem:[%s1 + $0x48] sm:$0xff]
    %v38 = vld [vmem:[%s1 + $0x50] sm:$0xff]
    %v39 = vld [vmem:[%s1 + $0x58] sm:$0xff]
    %v40 = vld [vmem:[%s1 + $0x60] sm:$0xff]
    %v41 = vld [vmem:[%s1 + $0x68] sm:$0xff]
    %v42 = vld [vmem:[%s1 + $0x70] sm:$0xff]
    %v43 = vld [vmem:[%s1 + $0x78] sm:$0xff]
    %v44 = vld [vmem:[%s1 + $0x80] sm:$0xff]
    %v45 = vld [vmem:[%s1 + $0x88] sm:$0xff]
    %v46 = vld [vmem:[%s1 + $0x90] sm:$0xff]
    %v47 = vld [vmem:[%s1 + $0x98] sm:$0xff]
    %v48 = vld [vmem:[%s1 + $0xa0] sm:$0xff]
    %v49 = vld [vmem:[%s1 + $0xa8] sm:$0xff]
    %v50 = vld [vmem:[%s1 + $0xb0] sm:$0xff]
    %v51 = vld [vmem:[%s1 + $0xb8] sm:$0xff]
    %v52 = vld [vmem:[%s1 + $0xc0] sm:$0xff]
    %v53 = vld [vmem:[%s1 + $0xc8] sm:$0xff]
    %v54 = vld [vmem:[%s1 + $0xd0] sm:$0xff]
    %v55 = vld [vmem:[%s1 + $0xd8] sm:$0xff]
    %v56 = vld [vmem:[%s1 + $0xe0] sm:$0xff]
    %v57 = vld [vmem:[%s1 + $0xe8] sm:$0xff]
    %v58 = vld [vmem:[%s1 + $0xf0] sm:$0xff]
    %v59 = vld [vmem:[%s1 + $0xf8] sm:$0xff]
    %v60 = vld [vmem:[%s1 + $0x100] sm:$0xff]
    %v61 = vld [vmem:[%s1 + $0x108] sm:$0xff]
    %v62 = vld [vmem:[%s1 + $0x110] sm:$0xff]
    %v63 = vld [vmem:[%s1 + $0x118] sm:$0xff]
    %v64 = vld [vmem:[%s1 + $0x120] sm:$0xff]
    %v65 = vld [vmem:[%s1 + $0x128] sm:$0xff]
    %v66 = vld [vmem:[%s1 + $0x130] sm:$0xff]
    %v67 = vld [vmem:[%s1 + $0x138] sm:$0xff]
    %v68 = vld [vmem:[%s1 + $0x140] sm:$0xff]
    %v69 = vld [vmem:[%s1 + $0x148] sm:$0xff]
    %v70 = vld [vmem:[%s1 + $0x150] sm:$0xff]
    %v71 = vld [vmem:[%s1 + $0x158] sm:$0xff]
    %v72 = vld [vmem:[%s1 + $0x160] sm:$0xff]
    %v73 = vld [vmem:[%s1 + $0x168] sm:$0xff]
    %v74 = vld [vmem:[%s1 + $0x170] sm:$0xff]
    %v75 = vld [vmem:[%s1 + $0x178] sm:$0xff]
    %v76 = vld [vmem:[%s1 + $0x180] sm:$0xff]
    %v77 = vld [vmem:[%s1 + $0x188] sm:$0xff]
    %v78 = vld [vmem:[%s1 + $0x190] sm:$0xff]
    %v79 = vld [vmem:[%s1 + $0x198] sm:$0xff]
    %v80 = vld [vmem:[%s1 + $0x1a0] sm:$0xff]
    %v81 = vld [vmem:[%s1 + $0x1a8] sm:$0xff]
    %v82 = vld [vmem:[%s1 + $0x1b0] sm:$0xff]
    %v83 = vld [vmem:[%s1 + $0x1b8] sm:$0xff]
    %v84 = vld [vmem:[%s1 + $0x1c0] sm:$0xff]
    %v85 = vld [vmem:[%s1 + $0x1c8] sm:$0xff]
    %v86 = vld [vmem:[%s1 + $0x1d0] sm:$0xff]
    %v87 = vld [vmem:[%s1 + $0x1d8] sm:$0xff]
    %v88 = vld [vmem:[%s1 + $0x1e0] sm:$0xff]
    %v89 = vld [vmem:[%s1 + $0x1e8] sm:$0xff]
    %v90 = vld [vmem:[%s1 + $0x1f0] sm:$0xff]
    %v91 = vld [vmem:[%s1 + $0x1f8] sm:$0xff]
    %v92 = vld [vmem:[%s1 + $0x200] sm:$0xff]
    %v93 = vld [vmem:[%s1 + $0x208] sm:$0xff]
    %v94 = vld [vmem:[%s1 + $0x210] sm:$0xff]
    %v95 = vld [vmem:[%s1 + $0x218] sm:$0xff]
    %v96 = vld [vmem:[%s1 + $0x220] sm:$0xff]
    %v97 = vld [vmem:[%s1 + $0x228] sm:$0xff]
    %v98 = vld [vmem:[%s1 + $0x230] sm:$0xff]
    %v99 = vld [vmem:[%s1 + $0x238] sm:$0xff]
    %v100 = vld [vmem:[%s1 + $0x240] sm:$0xff]
    %v101 = vld [vmem:[%s1 + $0x248] sm:$0x33]
    %v102 = vld [vmem:[%s2] sm:$0x3]
    %v104 = vlaneseq
    %v105 = vshrl.u32 %v104, 7
    %v106 = vsub.s32 0, %v105
    %v107 = vrot.slane %v102, %v106
    %v108 = vlaneseq
    %v109 = vshrl.u32 %v108, 7
    %v110 = vsub.s32 1, %v109
    %v111 = vrot.slane %v102, %v110
    %v126 = vunpack.c.l.b16 %v16
    %v127 = vunpack.c.h.b16 %v16
    %v128 = vunpack.c.l.b16 %v17
    %v129 = vunpack.c.h.b16 %v17
    %v130 = vunpack.c.l.b16 %v18
    %v131 = vunpack.c.l.b16 %v19
    %v132 = vunpack.c.h.b16 %v19
    %v133 = vunpack.c.l.b16 %v20
    %v134 = vunpack.c.h.b16 %v20
    %v135 = vunpack.c.l.b16 %v21
    %v136 = vunpack.c.l.b16 %v22
    %v137 = vunpack.c.h.b16 %v22
    %v138 = vunpack.c.l.b16 %v23
    %v139 = vunpack.c.h.b16 %v23
    %v140 = vunpack.c.l.b16 %v24
    %v141 = vunpack.c.l.b16 %v25
    %v142 = vunpack.c.h.b16 %v25
    %v143 = vunpack.c.l.b16 %v26
    %v144 = vunpack.c.h.b16 %v26
    %v145 = vunpack.c.l.b16 %v27
    %v146 = vpack.c.b16 %v131, %v126
    %v147 = vpack.c.b16 %v132, %v127
    %v148 = vpack.c.b16 %v133, %v128
    %v149 = vpack.c.b16 %v134, %v129
    %v150 = vpack.c.b16 %v135, %v130
    %v151 = vpack.c.b16 %v141, %v136
    %v152 = vpack.c.b16 %v142, %v137
    %v153 = vpack.c.b16 %v143, %v138
    %v154 = vpack.c.b16 %v144, %v139
    %v155 = vpack.c.b16 %v145, %v140
    %v238 = vunpack.c.l.b16 %v28
    %v239 = vunpack.c.h.b16 %v28
    %v240 = vunpack.c.l.b16 %v29
    %v241 = vunpack.c.h.b16 %v29
    %v242 = vunpack.c.l.b16 %v30
    %v243 = vunpack.c.h.b16 %v30
    %v244 = vunpack.c.l.b16 %v31
    %v245 = vunpack.c.h.b16 %v31
    %v246 = vunpack.c.l.b16 %v32
    %v247 = vunpack.c.h.b16 %v32
    %v248 = vunpack.c.l.b16 %v33
    %v249 = vunpack.c.h.b16 %v33
    %v250 = vunpack.c.l.b16 %v34
    %v251 = vunpack.c.h.b16 %v34
    %v252 = vunpack.c.l.b16 %v35
    %v253 = vunpack.c.h.b16 %v35
    %v254 = vunpack.c.l.b16 %v36
    %v255 = vunpack.c.h.b16 %v36
    %v256 = vunpack.c.l.b16 %v37
    %v257 = vunpack.c.h.b16 %v37
    %v258 = vunpack.c.l.b16 %v38
    %v259 = vunpack.c.h.b16 %v38
    %v260 = vunpack.c.l.b16 %v39
    %v261 = vunpack.c.h.b16 %v39
    %v262 = vunpack.c.l.b16 %v40
    %v263 = vunpack.c.h.b16 %v40
    %v264 = vunpack.c.l.b16 %v41
    %v265 = vunpack.c.h.b16 %v41
    %v266 = vunpack.c.l.b16 %v42
    %v267 = vunpack.c.h.b16 %v42
    %v268 = vunpack.c.l.b16 %v43
    %v269 = vunpack.c.h.b16 %v43
    %v270 = vunpack.c.l.b16 %v44
    %v271 = vunpack.c.h.b16 %v44
    %v272 = vunpack.c.l.b16 %v45
    %v273 = vunpack.c.h.b16 %v45
    %v274 = vunpack.c.l.b16 %v46
    %v275 = vunpack.c.h.b16 %v46
    %v276 = vunpack.c.l.b16 %v47
    %v277 = vunpack.c.h.b16 %v47
    %v278 = vunpack.c.l.b16 %v48
    %v279 = vunpack.c.h.b16 %v48
    %v280 = vunpack.c.l.b16 %v49
    %v281 = vunpack.c.h.b16 %v49
    %v282 = vunpack.c.l.b16 %v50
    %v283 = vunpack.c.h.b16 %v50
    %v284 = vunpack.c.l.b16 %v51
    %v285 = vunpack.c.h.b16 %v51
    %v286 = vunpack.c.l.b16 %v52
    %v287 = vunpack.c.h.b16 %v52
    %v288 = vunpack.c.l.b16 %v53
    %v289 = vunpack.c.h.b16 %v53
    %v290 = vunpack.c.l.b16 %v54
    %v291 = vunpack.c.h.b16 %v54
    %v292 = vunpack.c.l.b16 %v55
    %v293 = vunpack.c.h.b16 %v55
    %v294 = vunpack.c.l.b16 %v56
    %v295 = vunpack.c.h.b16 %v56
    %v296 = vunpack.c.l.b16 %v57
    %v297 = vunpack.c.h.b16 %v57
    %v298 = vunpack.c.l.b16 %v58
    %v299 = vunpack.c.h.b16 %v58
    %v300 = vunpack.c.l.b16 %v59
    %v301 = vunpack.c.h.b16 %v59
    %v302 = vunpack.c.l.b16 %v60
    %v303 = vunpack.c.h.b16 %v60
    %v304 = vunpack.c.l.b16 %v61
    %v305 = vunpack.c.h.b16 %v61
    %v306 = vunpack.c.l.b16 %v62
    %v307 = vunpack.c.h.b16 %v62
    %v308 = vunpack.c.l.b16 %v63
    %v309 = vunpack.c.h.b16 %v63
    %v310 = vunpack.c.l.b16 %v64
    %v311 = vunpack.c.h.b16 %v64
    %v312 = vunpack.c.l.b16 %v65
    %v313 = vunpack.c.h.b16 %v65
    %v314 = vunpack.c.l.b16 %v66
    %v315 = vunpack.c.h.b16 %v66
    %v316 = vunpack.c.l.b16 %v67
    %v317 = vunpack.c.h.b16 %v67
    %v318 = vunpack.c.l.b16 %v68
    %v319 = vunpack.c.h.b16 %v68
    %v320 = vunpack.c.l.b16 %v69
    %v321 = vunpack.c.h.b16 %v69
    %v322 = vunpack.c.l.b16 %v70
    %v323 = vunpack.c.h.b16 %v70
    %v324 = vunpack.c.l.b16 %v71
    %v325 = vunpack.c.h.b16 %v71
    %v326 = vunpack.c.l.b16 %v72
    %v327 = vunpack.c.h.b16 %v72
    %v328 = vunpack.c.l.b16 %v73
    %v329 = vunpack.c.h.b16 %v73
    %v330 = vunpack.c.l.b16 %v74
    %v331 = vunpack.c.h.b16 %v74
    %v332 = vunpack.c.l.b16 %v75
    %v333 = vunpack.c.h.b16 %v75
    %v334 = vunpack.c.l.b16 %v76
    %v335 = vunpack.c.h.b16 %v76
    %v336 = vunpack.c.l.b16 %v77
    %v337 = vunpack.c.h.b16 %v77
    %v338 = vunpack.c.l.b16 %v78
    %v339 = vunpack.c.h.b16 %v78
    %v340 = vunpack.c.l.b16 %v79
    %v341 = vunpack.c.h.b16 %v79
    %v342 = vunpack.c.l.b16 %v80
    %v343 = vunpack.c.h.b16 %v80
    %v344 = vunpack.c.l.b16 %v81
    %v345 = vunpack.c.h.b16 %v81
    %v346 = vunpack.c.l.b16 %v82
    %v347 = vunpack.c.h.b16 %v82
    %v348 = vunpack.c.l.b16 %v83
    %v349 = vunpack.c.h.b16 %v83
    %v350 = vunpack.c.l.b16 %v84
    %v351 = vunpack.c.h.b16 %v84
    %v352 = vunpack.c.l.b16 %v85
    %v353 = vunpack.c.h.b16 %v85
    %v354 = vunpack.c.l.b16 %v86
    %v355 = vunpack.c.h.b16 %v86
    %v356 = vunpack.c.l.b16 %v87
    %v357 = vunpack.c.h.b16 %v87
    %v358 = vunpack.c.l.b16 %v88
    %v359 = vunpack.c.h.b16 %v88
    %v360 = vunpack.c.l.b16 %v89
    %v361 = vunpack.c.h.b16 %v89
    %v362 = vunpack.c.l.b16 %v90
    %v363 = vunpack.c.h.b16 %v90
    %v364 = vunpack.c.l.b16 %v91
    %v365 = vunpack.c.h.b16 %v91
    %v366 = vunpack.c.l.b16 %v92
    %v367 = vunpack.c.h.b16 %v92
    %v368 = vunpack.c.l.b16 %v93
    %v369 = vunpack.c.h.b16 %v93
    %v370 = vunpack.c.l.b16 %v94
    %v371 = vunpack.c.h.b16 %v94
    %v372 = vunpack.c.l.b16 %v95
    %v373 = vunpack.c.h.b16 %v95
    %v374 = vunpack.c.l.b16 %v96
    %v375 = vunpack.c.h.b16 %v96
    %v376 = vunpack.c.l.b16 %v97
    %v377 = vunpack.c.h.b16 %v97
    %v378 = vunpack.c.l.b16 %v98
    %v379 = vunpack.c.h.b16 %v98
    %v380 = vunpack.c.l.b16 %v99
    %v381 = vunpack.c.h.b16 %v99
    %v382 = vunpack.c.l.b16 %v100
    %v383 = vunpack.c.h.b16 %v100
    %v384 = vunpack.c.l.b16 %v101
    %v385 = vunpack.c.h.b16 %v101
    %v386 = vpack.c.b16 %v240, %v238
    %v387 = vpack.c.b16 %v241, %v239
    %v388 = vpack.c.b16 %v244, %v242
    %v389 = vpack.c.b16 %v245, %v243
    %v390 = vpack.c.b16 %v248, %v246
    %v391 = vpack.c.b16 %v249, %v247
    %v392 = vpack.c.b16 %v252, %v250
    %v393 = vpack.c.b16 %v253, %v251
    %v394 = vpack.c.b16 %v256, %v254
    %v395 = vpack.c.b16 %v257, %v255
    %v396 = vpack.c.b16 %v260, %v258
    %v397 = vpack.c.b16 %v261, %v259
    %v398 = vpack.c.b16 %v264, %v262
    %v399 = vpack.c.b16 %v265, %v263
    %v400 = vpack.c.b16 %v268, %v266
    %v401 = vpack.c.b16 %v269, %v267
    %v402 = vpack.c.b16 %v272, %v270
    %v403 = vpack.c.b16 %v273, %v271
    %v404 = vpack.c.b16 %v276, %v274
    %v405 = vpack.c.b16 %v277, %v275
    %v406 = vpack.c.b16 %v280, %v278
    %v407 = vpack.c.b16 %v281, %v279
    %v408 = vpack.c.b16 %v284, %v282
    %v409 = vpack.c.b16 %v285, %v283
    %v410 = vpack.c.b16 %v288, %v286
    %v411 = vpack.c.b16 %v289, %v287
    %v412 = vpack.c.b16 %v292, %v290
    %v413 = vpack.c.b16 %v293, %v291
    %v414 = vpack.c.b16 %v296, %v294
    %v415 = vpack.c.b16 %v297, %v295
    %v416 = vpack.c.b16 %v300, %v298
    %v417 = vpack.c.b16 %v301, %v299
    %v418 = vpack.c.b16 %v304, %v302
    %v419 = vpack.c.b16 %v305, %v303
    %v420 = vpack.c.b16 %v308, %v306
    %v421 = vpack.c.b16 %v309, %v307
    %v422 = vpack.c.b16 %v312, %v310
    %v423 = vpack.c.b16 %v313, %v311
    %v424 = vpack.c.b16 %v316, %v314
    %v425 = vpack.c.b16 %v317, %v315
    %v426 = vpack.c.b16 %v320, %v318
    %v427 = vpack.c.b16 %v321, %v319
    %v428 = vpack.c.b16 %v324, %v322
    %v429 = vpack.c.b16 %v325, %v323
    %v430 = vpack.c.b16 %v328, %v326
    %v431 = vpack.c.b16 %v329, %v327
    %v432 = vpack.c.b16 %v332, %v330
    %v433 = vpack.c.b16 %v333, %v331
    %v434 = vpack.c.b16 %v336, %v334
    %v435 = vpack.c.b16 %v337, %v335
    %v436 = vpack.c.b16 %v340, %v338
    %v437 = vpack.c.b16 %v341, %v339
    %v438 = vpack.c.b16 %v344, %v342
    %v439 = vpack.c.b16 %v345, %v343
    %v440 = vpack.c.b16 %v348, %v346
    %v441 = vpack.c.b16 %v349, %v347
    %v442 = vpack.c.b16 %v352, %v350
    %v443 = vpack.c.b16 %v353, %v351
    %v444 = vpack.c.b16 %v356, %v354
    %v445 = vpack.c.b16 %v357, %v355
    %v446 = vpack.c.b16 %v360, %v358
    %v447 = vpack.c.b16 %v361, %v359
    %v448 = vpack.c.b16 %v364, %v362
    %v449 = vpack.c.b16 %v365, %v363
    %v450 = vpack.c.b16 %v368, %v366
    %v451 = vpack.c.b16 %v369, %v367
    %v452 = vpack.c.b16 %v372, %v370
    %v453 = vpack.c.b16 %v373, %v371
    %v454 = vpack.c.b16 %v376, %v374
    %v455 = vpack.c.b16 %v377, %v375
    %v456 = vpack.c.b16 %v380, %v378
    %v457 = vpack.c.b16 %v381, %v379
    %v458 = vpack.c.b16 %v384, %v382
    %v459 = vpack.c.b16 %v385, %v383
    %vm532 = vcmask 621568
    %v534 = vsel %vm532, %v150, 0
    %v537 = vsel %vm532, %v155, 0
    %vm539 = vcmask 1045504
    %v541 = vsel %vm539, %v458, 0
    %v544 = vsel %vm539, %v459, 0
    %546 = vmatprep.subr.bf16.mxu0 %v387
    %547 = vmatpush1.bf16.msra.mxu0 %v386
    %548 = vmatprep.subr.bf16.mxu0 %v389
    %549 = vmatpush1.bf16.msra.mxu0 %v388
    %550 = vmatprep.subr.bf16.mxu0 %v391
    %551 = vmatpush1.bf16.msra.mxu0 %v390
    %552 = vmatprep.subr.bf16.mxu0 %v393
    %553 = vmatpush1.bf16.msra.mxu0 %v392
    %554 = vmatprep.subr.bf16.mxu0 %v395
    %555 = vmatpush1.bf16.msra.mxu0 %v394
    %556 = vmatprep.subr.bf16.mxu0 %v397
    %557 = vmatpush1.bf16.msra.mxu0 %v396
    %558 = vmatprep.subr.bf16.mxu0 %v399
    %559 = vmatpush1.bf16.msra.mxu0 %v398
    %560 = vmatprep.subr.bf16.mxu0 %v401
    %561 = vmatpush1.bf16.msra.mxu0 %v400
    %562 = vmatprep.subr.bf16.mxu0 %v403
    %563 = vmatpush1.bf16.msra.mxu0 %v402
    %564 = vmatprep.subr.bf16.mxu0 %v405
    %565 = vmatpush1.bf16.msra.mxu0 %v404
    %566 = vmatprep.subr.bf16.mxu0 %v407
    %567 = vmatpush1.bf16.msra.mxu0 %v406
    %568 = vmatprep.subr.bf16.mxu0 %v409
    %569 = vmatpush1.bf16.msra.mxu0 %v408
    %570 = vmatprep.subr.bf16.mxu0 %v411
    %571 = vmatpush1.bf16.msra.mxu0 %v410
    %572 = vmatprep.subr.bf16.mxu0 %v413
    %573 = vmatpush1.bf16.msra.mxu0 %v412
    %574 = vmatprep.subr.bf16.mxu0 %v415
    %575 = vmatpush1.bf16.msra.mxu0 %v414
    %576 = vmatprep.subr.bf16.mxu0 %v417
    %577 = vmatpush1.bf16.msra.mxu0 %v416
    %578 = vmatprep.mubr.bf16.mxu0 %v147
    %579 = vmatmul.mubr.bf16.gmra.mrb[0].mxu0 %v146
    %v580 = vpop.f32.mrb[0].mxu0
    %v581 = vadd.f32 %v107, %v580
    %v582 = vpop.f32.mrb[0].mxu0
    %v583 = vadd.f32 %v111, %v582
    %v584 = vpop.f32.mrb[0].mxu0
    %v585 = vadd.f32 %v107, %v584
    %v586 = vpop.f32.mrb[0].mxu0
    %v587 = vadd.f32 %v111, %v586
    %588 = vmatprep.mubr.bf16.mxu0 %v152
    %589 = vmatmul.mubr.bf16.gmra.mrb[0].mxu0 %v151
    %v590 = vpop.f32.mrb[0].mxu0
    %v591 = vadd.f32 %v107, %v590
    %v592 = vpop.f32.mrb[0].mxu0
    %v593 = vadd.f32 %v111, %v592
    %v594 = vpop.f32.mrb[0].mxu0
    %v595 = vadd.f32 %v107, %v594
    %v596 = vpop.f32.mrb[0].mxu0
    %v597 = vadd.f32 %v111, %v596
    %598 = vdwg.mxu0
    %599 = vmatprep.subr.bf16.mxu0 %v419
    %600 = vmatpush1.bf16.msra.mxu0 %v418
    %601 = vmatprep.subr.bf16.mxu0 %v421
    %602 = vmatpush1.bf16.msra.mxu0 %v420
    %603 = vmatprep.subr.bf16.mxu0 %v423
    %604 = vmatpush1.bf16.msra.mxu0 %v422
    %605 = vmatprep.subr.bf16.mxu0 %v425
    %606 = vmatpush1.bf16.msra.mxu0 %v424
    %607 = vmatprep.subr.bf16.mxu0 %v427
    %608 = vmatpush1.bf16.msra.mxu0 %v426
    %609 = vmatprep.subr.bf16.mxu0 %v429
    %610 = vmatpush1.bf16.msra.mxu0 %v428
    %611 = vmatprep.subr.bf16.mxu0 %v431
    %612 = vmatpush1.bf16.msra.mxu0 %v430
    %613 = vmatprep.subr.bf16.mxu0 %v433
    %614 = vmatpush1.bf16.msra.mxu0 %v432
    %615 = vmatprep.subr.bf16.mxu0 %v435
    %616 = vmatpush1.bf16.msra.mxu0 %v434
    %617 = vmatprep.subr.bf16.mxu0 %v437
    %618 = vmatpush1.bf16.msra.mxu0 %v436
    %619 = vmatprep.subr.bf16.mxu0 %v439
    %620 = vmatpush1.bf16.msra.mxu0 %v438
    %621 = vmatprep.subr.bf16.mxu0 %v441
    %622 = vmatpush1.bf16.msra.mxu0 %v440
    %623 = vmatprep.subr.bf16.mxu0 %v443
    %624 = vmatpush1.bf16.msra.mxu0 %v442
    %625 = vmatprep.subr.bf16.mxu0 %v445
    %626 = vmatpush1.bf16.msra.mxu0 %v444
    %627 = vmatprep.subr.bf16.mxu0 %v447
    %628 = vmatpush1.bf16.msra.mxu0 %v446
    %629 = vmatprep.subr.bf16.mxu0 %v449
    %630 = vmatpush1.bf16.msra.mxu0 %v448
    %631 = vmatprep.mubr.bf16.mxu0 %v149
    %632 = vmatmul.mubr.bf16.gmra.mrb[0].mxu0 %v148
    %v633 = vpop.f32.mrb[0].mxu0
    %v634 = vadd.f32 %v581, %v633
    %v635 = vpop.f32.mrb[0].mxu0
    %v636 = vadd.f32 %v583, %v635
    %v637 = vpop.f32.mrb[0].mxu0
    %v638 = vadd.f32 %v585, %v637
    %v639 = vpop.f32.mrb[0].mxu0
    %v640 = vadd.f32 %v587, %v639
    %641 = vmatprep.mubr.bf16.mxu0 %v154
    %642 = vmatmul.mubr.bf16.gmra.mrb[0].mxu0 %v153
    %v643 = vpop.f32.mrb[0].mxu0
    %v644 = vadd.f32 %v591, %v643
    %v645 = vpop.f32.mrb[0].mxu0
    %v646 = vadd.f32 %v593, %v645
    %v647 = vpop.f32.mrb[0].mxu0
    %v648 = vadd.f32 %v595, %v647
    %v649 = vpop.f32.mrb[0].mxu0
    %v650 = vadd.f32 %v597, %v649
    %651 = vdwg.mxu0
    %652 = vmatprep.subr.bf16.mxu0 %v451
    %653 = vmatpush1.bf16.msra.mxu0 %v450
    %654 = vmatprep.subr.bf16.mxu0 %v453
    %655 = vmatpush1.bf16.msra.mxu0 %v452
    %656 = vmatprep.subr.bf16.mxu0 %v455
    %657 = vmatpush1.bf16.msra.mxu0 %v454
    %658 = vmatprep.subr.bf16.mxu0 %v457
    %659 = vmatpush1.bf16.msra.mxu0 %v456
    %660 = vmatprep.subr.bf16.mxu0 %v544
    %661 = vmatpush1.bf16.msra.mxu0 %v541
    %662 = vmatprep.subr.bf16.mxu0 0
    %663 = vmatpush1.bf16.msra.mxu0 0
    %664 = vmatprep.subr.bf16.mxu0 0
    %665 = vmatpush1.bf16.msra.mxu0 0
    %666 = vmatprep.subr.bf16.mxu0 0
    %667 = vmatpush1.bf16.msra.mxu0 0
    %668 = vmatprep.subr.bf16.mxu0 0
    %669 = vmatpush1.bf16.msra.mxu0 0
    %670 = vmatprep.subr.bf16.mxu0 0
    %671 = vmatpush1.bf16.msra.mxu0 0
    %672 = vmatprep.subr.bf16.mxu0 0
    %673 = vmatpush1.bf16.msra.mxu0 0
    %674 = vmatprep.subr.bf16.mxu0 0
    %675 = vmatpush1.bf16.msra.mxu0 0
    %676 = vmatprep.subr.bf16.mxu0 0
    %677 = vmatpush1.bf16.msra.mxu0 0
    %678 = vmatprep.subr.bf16.mxu0 0
    %679 = vmatpush1.bf16.msra.mxu0 0
    %680 = vmatprep.subr.bf16.mxu0 0
    %681 = vmatpush1.bf16.msra.mxu0 0
    %682 = vmatprep.subr.bf16.mxu0 0
    %683 = vmatpush1.bf16.msra.mxu0 0
    %684 = vmatprep.mubr.bf16.mxu0 0
    %685 = vmatmul.mubr.bf16.gmra.mrb[0].mxu0 %v534
    %v686 = vpop.f32.mrb[0].mxu0
    %v687 = vadd.f32 %v634, %v686
    %v688 = vpop.f32.mrb[0].mxu0
    %v689 = vadd.f32 %v636, %v688
    %v690 = vpop.f32.mrb[0].mxu0
    %v691 = vadd.f32 %v638, %v690
    %v692 = vpop.f32.mrb[0].mxu0
    %v693 = vadd.f32 %v640, %v692
    %694 = vmatprep.mubr.bf16.mxu0 0
    %695 = vmatmul.mubr.bf16.gmra.mrb[0].mxu0 %v537
    %v696 = vpop.f32.mrb[0].mxu0
    %v697 = vadd.f32 %v644, %v696
    %v698 = vpop.f32.mrb[0].mxu0
    %v699 = vadd.f32 %v646, %v698
    %v700 = vpop.f32.mrb[0].mxu0
    %v701 = vadd.f32 %v648, %v700
    %v702 = vpop.f32.mrb[0].mxu0
    %v703 = vadd.f32 %v650, %v702
    %704 = vdwg.mxu0
    %705 = vst [vmem:[#allocation2] sm:$0xff] %v687
    %706 = vst [vmem:[#allocation2 + $0x8] sm:$0xff] %v689
    %707 = vst [vmem:[#allocation2 + $0x10] sm:$0xff] %v691
    %708 = vst [vmem:[#allocation2 + $0x18] sm:$0xff] %v693
    %709 = vst [vmem:[#allocation2 + $0x20] sm:$0xff] %v697
    %710 = vst [vmem:[#allocation2 + $0x28] sm:$0xff] %v699
    %711 = vst [vmem:[#allocation2 + $0x30] sm:$0xff] %v701
    %712 = vst [vmem:[#allocation2 + $0x38] sm:$0xff] %v703
    // Predicated region
    $region14: #{patch_embed.1} parent=1 // pred_check
      _
    $region15: #{patch_embed.1} parent=1 // pred_check_branch
      %714 = sbr.rel (0) target = $region17
    $region16: #{patch_embed.1} parent=1 // pred_region
      %s716 = ssub.s32 1024, 1024
      %717 = vsyncadd [#allocation3], %s716
      %s718 = sshll.u32 [#allocation2], 4
      %s719 = int_to_ptr.vmem [resolvable:$true] %s718
      %724 = dma.vmem_to_hbm [thread:$0]  %s719, 1024, %s3, [#allocation3], 256, 256, 16
    $region17: #{patch_embed.1} parent=1 // pred_fallthru
      _
    // Predicated region
    $region18: #{patch_embed.1} parent=1 // pred_check
      _
    $region19: #{patch_embed.1} parent=1 // pred_check_branch
      %726 = sbr.rel (0) target = $region21
    $region20: #{patch_embed.1} parent=1 // pred_region
      %727 = dma.done [#allocation3], 1024
    $region21: #{patch_embed.1} parent=1 // pred_fallthru
      _
    %728 = vsyncpa [#allocation3], 1

</llo_original>
